<compile_context>
chip_gen: v7x
topology: tpu7x:2x2x1
jax: 0.10.0
libtpu: 0.0.40
codegen_flags: <defaults>
</compile_context>

<pallas_src>
import functools

import jax
import jax.numpy as jnp
from jax.experimental import pallas as pl
from jax.experimental.pallas import tpu as pltpu

EPS = 1e-7


def _sampler_kernel(mask_ref, means_ref, logvars_ref, *rest, is_inference):
    # mask_ref    : (B, M)            SMEM int32 (scalar prefetch)
    # means_ref   : (M, 1, St, 128)   VMEM, native dtype
    # logvars_ref : (M, 1, St, 128)   VMEM, native dtype
    # rest        : (noise_ref, out_ref) in training, (out_ref,) at inference
    if is_inference:
        (out_ref,) = rest
        noise_ref = None
    else:
        noise_ref, out_ref = rest

    b = pl.program_id(0)
    M = means_ref.shape[0]

    # Prior contribution: T_prior = 1 + log_prior = 1, mu_prior = 0.
    t_sum = None
    mu_sum = None
    for m in range(M):                                   # static loop, M small
        w = mask_ref[b, m].astype(jnp.float32)           # scalar 0/1 from SMEM
        logv = logvars_ref[m, 0].astype(jnp.float32)     # (St, 128)
        mean = means_ref[m, 0].astype(jnp.float32)       # (St, 128)
        prec = w * pl.reciprocal(jnp.exp(logv) + EPS)    # masked 1/(exp+eps)
        contrib = mean * prec
        t_sum = prec if t_sum is None else t_sum + prec
        mu_sum = contrib if mu_sum is None else mu_sum + contrib
    t_sum = t_sum + 1.0                                  # + prior precision

    inv_t = pl.reciprocal(t_sum)                         # exact; reused twice
    post_mean = mu_sum * inv_t

    if is_inference:
        out_ref[0] = post_mean.astype(out_ref.dtype)
    else:
        # exp(0.5 * log(1/T + eps)) == sqrt(1/T + eps)
        std = jnp.sqrt(inv_t + EPS)
        sample = post_mean + std * noise_ref[0].astype(jnp.float32)
        out_ref[0] = sample.astype(out_ref.dtype)


def _plan_tiles(N, cap=16384):
    """Return (Npad, tn): 128-aligned padded feature count and tile size."""
    if N <= cap:
        n_pad = ((N + 127) // 128) * 128
        return n_pad, n_pad
    tn = 8192                                            # 64 full (8,128) vregs
    n_pad = ((N + tn - 1) // tn) * tn
    return n_pad, tn


def gaussian_sampler(means, logvars, mask, noise=None, *, is_inference=False):
    """means/logvars: [M, B, C, H, W]; mask: [B, M] bool; noise: [B, C, H, W]."""
    M, B, C, H, W = means.shape
    N = C * H * W
    Npad, tn = _plan_tiles(N)
    S = Npad // 128
    St = tn // 128

    # Native-dtype, lane-dense views (no wrapper-side f32 upcast), zero-padded
    # along the feature dim when N is not a 128-multiple.
    means3 = means.reshape(M, B, N)
    logvars3 = logvars.reshape(M, B, N)
    if Npad != N:
        padw = ((0, 0), (0, 0), (0, Npad - N))
        means3 = jnp.pad(means3, padw)
        logvars3 = jnp.pad(logvars3, padw)
    means4 = means3.reshape(M, B, S, 128)
    logvars4 = logvars3.reshape(M, B, S, 128)
    mask_i = mask.astype(jnp.int32)                      # [B, M] -> SMEM scalars

    grid = (B, Npad // tn)

    in_specs = [
        pl.BlockSpec((M, 1, St, 128), lambda b, n, msk: (0, b, n, 0)),
        pl.BlockSpec((M, 1, St, 128), lambda b, n, msk: (0, b, n, 0)),
    ]
    args = [means4, logvars4]
    if not is_inference:
        assert noise is not None, "noise is required in training mode"
        noise2 = noise.reshape(B, N)
        if Npad != N:
            noise2 = jnp.pad(noise2, ((0, 0), (0, Npad - N)))
        args.append(noise2.reshape(B, S, 128))
        in_specs.append(
            pl.BlockSpec((1, St, 128), lambda b, n, msk: (b, n, 0)))
    out_spec = pl.BlockSpec((1, St, 128), lambda b, n, msk: (b, n, 0))

    # Double-buffered working set per grid step (means+logvars+noise+out).
    itm = means.dtype.itemsize
    per_step = 2 * M * tn * itm + tn * itm
    if not is_inference:
        per_step += tn * noise.dtype.itemsize
    vmem_limit = max(32 * 1024 * 1024, min(64 * 1024 * 1024, 4 * per_step))

    kernel = functools.partial(_sampler_kernel, is_inference=is_inference)

    out = pl.pallas_call(
        kernel,
        out_shape=jax.ShapeDtypeStruct((B, S, 128), means.dtype),
        grid_spec=pltpu.PrefetchScalarGridSpec(
            num_scalar_prefetch=1,          # mask -> SMEM
            grid=grid,
            in_specs=in_specs,
            out_specs=out_spec,
        ),
        compiler_params=pltpu.CompilerParams(
            dimension_semantics=("parallel", "parallel"),
            vmem_limit_bytes=vmem_limit,
        ),
    )(mask_i, *args)

    out = out.reshape(B, Npad)
    if Npad != N:
        out = out[:, :N]
    return out.reshape(B, C, H, W)
    # TODO(synk): optionally generate the noise in-kernel with
    # pltpu.prng_seed / pltpu.stateful_normal to drop the noise input stream;
    # kept as an explicit input here so the output is deterministic/verifiable.


def _reference(means, logvars, mask, noise, is_inference=False):
    """Pure-JAX port of the PyTorch forward (for verification)."""
    w = mask.T.astype(jnp.float32)[:, :, None, None, None]      # [M,B,1,1,1]
    means = means.astype(jnp.float32)
    logvars = logvars.astype(jnp.float32)
    prec = 1.0 / (jnp.exp(logvars) + EPS)
    T = jnp.concatenate([w * prec, jnp.ones_like(means[:1])], axis=0)
    mu = jnp.concatenate([w * (means * prec), jnp.zeros_like(means[:1])], axis=0)
    t_sum = jnp.sum(T, axis=0)
    post_mean = jnp.sum(mu, axis=0) / t_sum
    var = 1.0 / t_sum
    post_logvar = jnp.log(var + EPS)
    if is_inference:
        return post_mean
    return post_mean + jnp.exp(0.5 * post_logvar) * noise.astype(jnp.float32)


if __name__ == "__main__":
    key = jax.random.PRNGKey(0)
    k_means, k_logv, k_mask, k_noise = jax.random.split(key, 4)

    M, B, C, H, W = 3, 2, 4, 16, 16   # 3 modalities, batch 2, NCHW 4x16x16

    means = jax.random.normal(k_means, (M, B, C, H, W), dtype=jnp.float32)
    logvars = 0.5 * jax.random.normal(k_logv, (M, B, C, H, W), dtype=jnp.float32)
    mask = jax.random.bernoulli(k_mask, p=0.7, shape=(B, M))         # [B, M] bool
    # torch.randn equivalent generated host-side and fed to the kernel.
    noise = jax.random.normal(k_noise, (B, C, H, W), dtype=jnp.float32)

    # Training path (reparameterized sample).
    out = jax.block_until_ready(
        gaussian_sampler(means, logvars, mask, noise, is_inference=False))
    ref = _reference(means, logvars, mask, noise, is_inference=False)
    assert out.shape == (B, C, H, W)
    assert jnp.allclose(out, ref, atol=1e-5, rtol=1e-5), "mismatch vs reference"

    # Inference path (posterior mean only; noise input dropped entirely).
    out_inf = jax.block_until_ready(
        gaussian_sampler(means, logvars, mask, is_inference=True))
    ref_inf = _reference(means, logvars, mask, noise, is_inference=True)
    assert jnp.allclose(out_inf, ref_inf, atol=1e-5, rtol=1e-5)

    # Non-128-multiple feature dim exercises the padding path.
    C2, H2, W2 = 3, 10, 10            # N = 300 -> padded to 384
    means_p = jax.random.normal(k_means, (M, B, C2, H2, W2), dtype=jnp.float32)
    logv_p = 0.5 * jax.random.normal(k_logv, (M, B, C2, H2, W2), dtype=jnp.float32)
    noise_p = jax.random.normal(k_noise, (B, C2, H2, W2), dtype=jnp.float32)
    out_p = jax.block_until_ready(
        gaussian_sampler(means_p, logv_p, mask, noise_p, is_inference=False))
    ref_p = _reference(means_p, logv_p, mask, noise_p, is_inference=False)
    assert out_p.shape == (B, C2, H2, W2)
    assert jnp.allclose(out_p, ref_p, atol=1e-5, rtol=1e-5)

    # Native bf16 streaming path (no wrapper upcast): runs, keeps dtype, finite.
    out_bf = jax.block_until_ready(
        gaussian_sampler(means.astype(jnp.bfloat16),
                         logvars.astype(jnp.bfloat16),
                         mask,
                         noise.astype(jnp.bfloat16)))
    assert out_bf.shape == (B, C, H, W) and out_bf.dtype == jnp.bfloat16
    assert bool(jnp.all(jnp.isfinite(out_bf.astype(jnp.float32))))

    print("KERNEL_OK")
</pallas_src>

<mosaic_0001>
module attributes {stable_mosaic.version = 11 : i64} {
  func.func @_sampler_kernel(%arg0: i32, %arg1: i32, %arg2: memref<2x3xi32, #tpu.memory_space<smem>>, %arg3: memref<3x1x8x128xf32, #tpu.memory_space<vmem>>, %arg4: memref<3x1x8x128xf32, #tpu.memory_space<vmem>>, %arg5: memref<1x8x128xf32, #tpu.memory_space<vmem>>, %arg6: memref<1x8x128xf32, #tpu.memory_space<vmem>>) attributes {dimension_semantics = [#tpu.dimension_semantics<parallel>, #tpu.dimension_semantics<parallel>], iteration_bounds = array<i64: 2, 1>, scalar_prefetch = 1 : i64, scratch_operands = 0 : i64, tpu.core_type = #tpu.core_type<tc>, window_params = [{transform_indices = @transform_0, window_bounds = array<i64: 3, 1, 8, 128>}, {transform_indices = @transform_1, window_bounds = array<i64: 3, 1, 8, 128>}, {transform_indices = @transform_2, window_bounds = array<i64: 1, 8, 128>}, {transform_indices = @transform_3, window_bounds = array<i64: 1, 8, 128>}]} {
    %0 = arith.index_cast %arg0 : i32 to index
    %c0 = arith.constant 0 : index
    %1 = memref.load %arg2[%0, %c0] : memref<2x3xi32, #tpu.memory_space<smem>>
    %2 = arith.sitofp %1 : i32 to f32
    %c0_0 = arith.constant 0 : index
    %c0_1 = arith.constant 0 : index
    %c0_2 = arith.constant 0 : index
    %c0_3 = arith.constant 0 : index
    %3 = vector.load %arg4[%c0_0, %c0_1, %c0_2, %c0_3] : memref<3x1x8x128xf32, #tpu.memory_space<vmem>>, vector<1x1x8x128xf32>
    %4 = vector.shape_cast %3 : vector<1x1x8x128xf32> to vector<8x128xf32>
    %c0_4 = arith.constant 0 : index
    %c0_5 = arith.constant 0 : index
    %c0_6 = arith.constant 0 : index
    %c0_7 = arith.constant 0 : index
    %5 = vector.load %arg3[%c0_4, %c0_5, %c0_6, %c0_7] : memref<3x1x8x128xf32, #tpu.memory_space<vmem>>, vector<1x1x8x128xf32>
    %6 = vector.shape_cast %5 : vector<1x1x8x128xf32> to vector<8x128xf32>
    %7 = math.exp %4 : vector<8x128xf32>
    %cst = arith.constant 1.000000e-07 : f32
    %8 = vector.broadcast %cst : f32 to vector<8x128xf32>
    %9 = arith.addf %7, %8 : vector<8x128xf32>
    %10 = tpu.reciprocal %9 : vector<8x128xf32> -> vector<8x128xf32>
    %11 = vector.broadcast %2 : f32 to vector<8x128xf32>
    %12 = arith.mulf %11, %10 : vector<8x128xf32>
    %13 = arith.mulf %6, %12 : vector<8x128xf32>
    %14 = arith.index_cast %arg0 : i32 to index
    %c1 = arith.constant 1 : index
    %15 = memref.load %arg2[%14, %c1] : memref<2x3xi32, #tpu.memory_space<smem>>
    %16 = arith.sitofp %15 : i32 to f32
    %c1_8 = arith.constant 1 : index
    %c0_9 = arith.constant 0 : index
    %c0_10 = arith.constant 0 : index
    %c0_11 = arith.constant 0 : index
    %17 = vector.load %arg4[%c1_8, %c0_9, %c0_10, %c0_11] : memref<3x1x8x128xf32, #tpu.memory_space<vmem>>, vector<1x1x8x128xf32>
    %18 = vector.shape_cast %17 : vector<1x1x8x128xf32> to vector<8x128xf32>
    %c1_12 = arith.constant 1 : index
    %c0_13 = arith.constant 0 : index
    %c0_14 = arith.constant 0 : index
    %c0_15 = arith.constant 0 : index
    %19 = vector.load %arg3[%c1_12, %c0_13, %c0_14, %c0_15] : memref<3x1x8x128xf32, #tpu.memory_space<vmem>>, vector<1x1x8x128xf32>
    %20 = vector.shape_cast %19 : vector<1x1x8x128xf32> to vector<8x128xf32>
    %21 = math.exp %18 : vector<8x128xf32>
    %cst_16 = arith.constant 1.000000e-07 : f32
    %22 = vector.broadcast %cst_16 : f32 to vector<8x128xf32>
    %23 = arith.addf %21, %22 : vector<8x128xf32>
    %24 = tpu.reciprocal %23 : vector<8x128xf32> -> vector<8x128xf32>
    %25 = vector.broadcast %16 : f32 to vector<8x128xf32>
    %26 = arith.mulf %25, %24 : vector<8x128xf32>
    %27 = arith.mulf %20, %26 : vector<8x128xf32>
    %28 = arith.addf %12, %26 : vector<8x128xf32>
    %29 = arith.addf %13, %27 : vector<8x128xf32>
    %30 = arith.index_cast %arg0 : i32 to index
    %c2 = arith.constant 2 : index
    %31 = memref.load %arg2[%30, %c2] : memref<2x3xi32, #tpu.memory_space<smem>>
    %32 = arith.sitofp %31 : i32 to f32
    %c2_17 = arith.constant 2 : index
    %c0_18 = arith.constant 0 : index
    %c0_19 = arith.constant 0 : index
    %c0_20 = arith.constant 0 : index
    %33 = vector.load %arg4[%c2_17, %c0_18, %c0_19, %c0_20] : memref<3x1x8x128xf32, #tpu.memory_space<vmem>>, vector<1x1x8x128xf32>
    %34 = vector.shape_cast %33 : vector<1x1x8x128xf32> to vector<8x128xf32>
    %c2_21 = arith.constant 2 : index
    %c0_22 = arith.constant 0 : index
    %c0_23 = arith.constant 0 : index
    %c0_24 = arith.constant 0 : index
    %35 = vector.load %arg3[%c2_21, %c0_22, %c0_23, %c0_24] : memref<3x1x8x128xf32, #tpu.memory_space<vmem>>, vector<1x1x8x128xf32>
    %36 = vector.shape_cast %35 : vector<1x1x8x128xf32> to vector<8x128xf32>
    %37 = math.exp %34 : vector<8x128xf32>
    %cst_25 = arith.constant 1.000000e-07 : f32
    %38 = vector.broadcast %cst_25 : f32 to vector<8x128xf32>
    %39 = arith.addf %37, %38 : vector<8x128xf32>
    %40 = tpu.reciprocal %39 : vector<8x128xf32> -> vector<8x128xf32>
    %41 = vector.broadcast %32 : f32 to vector<8x128xf32>
    %42 = arith.mulf %41, %40 : vector<8x128xf32>
    %43 = arith.mulf %36, %42 : vector<8x128xf32>
    %44 = arith.addf %28, %42 : vector<8x128xf32>
    %45 = arith.addf %29, %43 : vector<8x128xf32>
    %cst_26 = arith.constant 1.000000e+00 : f32
    %46 = vector.broadcast %cst_26 : f32 to vector<8x128xf32>
    %47 = arith.addf %44, %46 : vector<8x128xf32>
    %48 = tpu.reciprocal %47 : vector<8x128xf32> -> vector<8x128xf32>
    %49 = arith.mulf %45, %48 : vector<8x128xf32>
    %cst_27 = arith.constant 1.000000e-07 : f32
    %50 = vector.broadcast %cst_27 : f32 to vector<8x128xf32>
    %51 = arith.addf %48, %50 : vector<8x128xf32>
    %52 = math.sqrt %51 : vector<8x128xf32>
    %c0_28 = arith.constant 0 : index
    %c0_29 = arith.constant 0 : index
    %c0_30 = arith.constant 0 : index
    %53 = vector.load %arg5[%c0_28, %c0_29, %c0_30] : memref<1x8x128xf32, #tpu.memory_space<vmem>>, vector<1x8x128xf32>
    %54 = vector.shape_cast %53 : vector<1x8x128xf32> to vector<8x128xf32>
    %55 = arith.mulf %52, %54 : vector<8x128xf32>
    %56 = arith.addf %49, %55 : vector<8x128xf32>
    %c0_31 = arith.constant 0 : index
    %c0_32 = arith.constant 0 : index
    %c0_33 = arith.constant 0 : index
    %57 = vector.load %arg6[%c0_31, %c0_32, %c0_33] : memref<1x8x128xf32, #tpu.memory_space<vmem>>, vector<1x8x128xf32>
    %58 = vector.shape_cast %57 : vector<1x8x128xf32> to vector<8x128xf32>
    %59 = vector.shape_cast %56 : vector<8x128xf32> to vector<1x8x128xf32>
    tpu.vector_store %arg6[%c0_31, %c0_32, %c0_33], %59 {strides = array<i32>} : memref<1x8x128xf32, #tpu.memory_space<vmem>>, vector<1x8x128xf32>,
    return
  }
  func.func @transform_0(%arg0: i32, %arg1: i32, %arg2: memref<2x3xi32, #tpu.memory_space<smem>>) -> (i32, i32, i32, i32) {
    %c0_i32 = arith.constant 0 : i32
    %c0_i32_0 = arith.constant 0 : i32
    %c0_i32_1 = arith.constant 0 : i32
    return %c0_i32, %arg0, %arg1, %c0_i32_0 : i32, i32, i32, i32
  }
  func.func @transform_1(%arg0: i32, %arg1: i32, %arg2: memref<2x3xi32, #tpu.memory_space<smem>>) -> (i32, i32, i32, i32) {
    %c0_i32 = arith.constant 0 : i32
    %c0_i32_0 = arith.constant 0 : i32
    %c0_i32_1 = arith.constant 0 : i32
    return %c0_i32, %arg0, %arg1, %c0_i32_0 : i32, i32, i32, i32
  }
  func.func @transform_2(%arg0: i32, %arg1: i32, %arg2: memref<2x3xi32, #tpu.memory_space<smem>>) -> (i32, i32, i32) {
    %c0_i32 = arith.constant 0 : i32
    %c0_i32_0 = arith.constant 0 : i32
    return %arg0, %arg1, %c0_i32 : i32, i32, i32
  }
  func.func @transform_3(%arg0: i32, %arg1: i32, %arg2: memref<2x3xi32, #tpu.memory_space<smem>>) -> (i32, i32, i32) {
    %c0_i32 = arith.constant 0 : i32
    %c0_i32_0 = arith.constant 0 : i32
    return %arg0, %arg1, %c0_i32 : i32, i32, i32
  }
}

</mosaic_0001>

<llo_original>
// kernel: tpu_custom_call.1
$region0: #{tpu_custom_call.1}
  #allocation0 [shape = 'u32[]', space=smem, size = 0x4, offset = 0x4, fixed_abs, tag = 'smem constant byte address 0x4 - core index']
  #allocation1 [shape = 'u32[144,128]{1,0:T(1,128)}', space=vmem, size = 0x12000, scoped, tag = 'internal scratch']
  #allocation2 [shape = 's32[1]{0}', space=sflag, size = 0x4, scoped, tag = 'scoped memory for tpu_custom_call.1']
  #allocation3 [shape = 'u8[1024]{0}', space=smem, size = 0x400, scoped, tag = 'prefetched SMEM operand 0']
  %s0 = inlined_call_operand.hbm [shape: s32[2,3], index: 0, kind: input, shape index: {}]
  %s1 = inlined_call_operand.hbm [shape: f32[3,2,8,128], index: 1, kind: input, shape index: {}]
  %s2 = inlined_call_operand.hbm [shape: f32[3,2,8,128], index: 2, kind: input, shape index: {}]
  %s3 = inlined_call_operand.hbm [shape: f32[2,8,128], index: 3, kind: input, shape index: {}]
  %s4 = inlined_call_operand.hbm [shape: f32[2,8,128], index: 4, kind: output, shape index: {}]
  %s5 = sld [smem:[#allocation0]]
  $region57: #{tpu_custom_call.1} parent=0
    _
  %s7 = ssub.s32 1, %s5
  %s8 = scalar_select 0, %s7, %s5
  %10 = dma.hbm_to_smem %s0, 32, [#allocation3], [#allocation2]
  %11 = dma.done [#allocation2], 32
  %12 = sfence
  $region1: #{tpu_custom_call.1} parent=0
    #allocation4 [shape = 'u8[24576]{0}', space=vmem, size = 0x6000, scoped, tag = 'input window, operand 1']
    #allocation5 [shape = 's32[2]{0}', space=sflag, size = 0x8, scoped, tag = 'scoped memory for tpu_custom_call.1']
    #allocation6 [shape = 's32[2]{0}', space=sflag, size = 0x8, scoped, tag = 'scoped memory for tpu_custom_call.1']
    #allocation7 [shape = 'u8[24576]{0}', space=vmem, size = 0x6000, scoped, tag = 'input window, operand 2']
    #allocation8 [shape = 's32[2]{0}', space=sflag, size = 0x8, scoped, tag = 'scoped memory for tpu_custom_call.1']
    #allocation9 [shape = 'u8[8192]{0}', space=vmem, size = 0x2000, scoped, tag = 'input window, operand 3']
    #allocation10 [shape = 'u8[8192]{0}', space=vmem, size = 0x2000, scoped, tag = 'output window, operand 0']
    %13 = vsyncpa [#allocation5], 0
    %s14 = scalar_lea.sflag [#allocation5], 1
    %15 = vsyncpa %s14, 0
    %16 = vsyncpa [#allocation8], 0
    %s17 = scalar_lea.sflag [#allocation8], 1
    %18 = vsyncpa %s17, 0
    %19 = vsyncpa [#allocation6], 0
    %s20 = scalar_lea.sflag [#allocation6], 1
    %21 = vsyncpa %s20, 0
    loop: start=0, step=1, limit=4
    $region2: #{tpu_custom_call.1} parent=1 // loop_pre_header
      _
    $region3: #{tpu_custom_call.1} parent=1 // loop_header
      %s23 = sphi 0, %s27
      %p24 = scmp.ge.s32.totalorder %s23, 4
      %s30 = sphi 0, %s42
      %s31 = sphi 0, %s38
      %s32 = sphi 0, %s30
      %s33 = sphi 0, %s31
      %s34 = sphi 0, %s32
      %s35 = sphi 0, %s33
      %s47 = sphi 0, %s49
      %s50 = sphi 0, %s47
      %s51 = sphi 0, %s50
      %s67 = sphi 0, %s51
      %s75 = sphi 0, %s77
      %s78 = sphi 0, %s75
      %s79 = sphi 0, %s78
      %s95 = sphi 0, %s79
      %s103 = sphi 0, %s105
      %s106 = sphi 0, %s103
      %s107 = sphi 0, %s106
      %s123 = sphi 0, %s107
      %s131 = sphi 0, %s133
      %s134 = sphi 0, %s131
      %s135 = sphi 0, %s134
      %s151 = sphi 0, %s135
    $region4: #{tpu_custom_call.1} parent=1 // loop_header_branch
      %26 = sbr.rel (%p24) target = $region8
    $region5: #{tpu_custom_call.1} parent=1 // loop_body
      %s28 = ssub.s32 %s23, 1
      %s29 = ssub.s32 %s23, 2
      %s36 = sadd.s32 1, %s31
      %p37 = scmp.ge.s32.totalorder %s36, 1
      %s38 = scalar_select %p37, 0, %s36
      %s39 = sadd.s32 1, %s30
      %s40 = scalar_select %p37, %s39, %s30
      %p41 = scmp.ge.s32.totalorder %s40, 2
      %s42 = scalar_select %p41, 0, %s40
      %s43 = ssub.s32 %s30, %s42
      %s44 = ssub.s32 %s31, %s38
      %s45 = sor.u32 %s43, %s44
      %p46 = scmp.eq.s32.totalorder %s45, 0
      %s48 = sadd.s32 %s47, 1
      %s49 = scalar_select %p46, %s47, %s48
      %p52 = pneg %p46
      %p53 = scmp.eq.s32.totalorder %s23, 1
      %p54 = por %p52, %p53
      %p55 = scmp.ne.s32.totalorder %s47, %s50
      %p56 = scmp.eq.s32.totalorder %s23, 0
      %p57 = por %p55, %p56
      %p58 = scmp.ne.s32.totalorder %s47, %s50
      %p59 = scmp.eq.s32.totalorder %s28, 1
      %p60 = por %p58, %p59
      %p61 = scmp.ne.s32.totalorder %s50, %s51
      %p62 = scmp.eq.s32.totalorder %s28, 0
      %p63 = por %p61, %p62
      %p64 = scmp.ne.s32.totalorder %s50, %s51
      %p65 = scmp.eq.s32.totalorder %s29, 1
      %p66 = por %p64, %p65
      %p68 = scmp.ne.s32.totalorder %s51, %s67
      %p69 = scmp.eq.s32.totalorder %s29, 0
      %p70 = por %p68, %p69
      %s71 = ssub.s32 %s30, %s42
      %s72 = ssub.s32 %s31, %s38
      %s73 = sor.u32 %s71, %s72
      %p74 = scmp.eq.s32.totalorder %s73, 0
      %s76 = sadd.s32 %s75, 1
      %s77 = scalar_select %p74, %s75, %s76
      %p80 = pneg %p74
      %p81 = scmp.eq.s32.totalorder %s23, 1
      %p82 = por %p80, %p81
      %p83 = scmp.ne.s32.totalorder %s75, %s78
      %p84 = scmp.eq.s32.totalorder %s23, 0
      %p85 = por %p83, %p84
      %p86 = scmp.ne.s32.totalorder %s75, %s78
      %p87 = scmp.eq.s32.totalorder %s28, 1
      %p88 = por %p86, %p87
      %p89 = scmp.ne.s32.totalorder %s78, %s79
      %p90 = scmp.eq.s32.totalorder %s28, 0
      %p91 = por %p89, %p90
      %p92 = scmp.ne.s32.totalorder %s78, %s79
      %p93 = scmp.eq.s32.totalorder %s29, 1
      %p94 = por %p92, %p93
      %p96 = scmp.ne.s32.totalorder %s79, %s95
      %p97 = scmp.eq.s32.totalorder %s29, 0
      %p98 = por %p96, %p97
      %s99 = ssub.s32 %s30, %s42
      %s100 = ssub.s32 %s31, %s38
      %s101 = sor.u32 %s99, %s100
      %p102 = scmp.eq.s32.totalorder %s101, 0
      %s104 = sadd.s32 %s103, 1
      %s105 = scalar_select %p102, %s103, %s104
      %p108 = pneg %p102
      %p109 = scmp.eq.s32.totalorder %s23, 1
      %p110 = por %p108, %p109
      %p111 = scmp.ne.s32.totalorder %s103, %s106
      %p112 = scmp.eq.s32.totalorder %s23, 0
      %p113 = por %p111, %p112
      %p114 = scmp.ne.s32.totalorder %s103, %s106
      %p115 = scmp.eq.s32.totalorder %s28, 1
      %p116 = por %p114, %p115
      %p117 = scmp.ne.s32.totalorder %s106, %s107
      %p118 = scmp.eq.s32.totalorder %s28, 0
      %p119 = por %p117, %p118
      %p120 = scmp.ne.s32.totalorder %s106, %s107
      %p121 = scmp.eq.s32.totalorder %s29, 1
      %p122 = por %p120, %p121
      %p124 = scmp.ne.s32.totalorder %s107, %s123
      %p125 = scmp.eq.s32.totalorder %s29, 0
      %p126 = por %p124, %p125
      %s127 = ssub.s32 %s30, %s42
      %s128 = ssub.s32 %s31, %s38
      %s129 = sor.u32 %s127, %s128
      %p130 = scmp.eq.s32.totalorder %s129, 0
      %s132 = sadd.s32 %s131, 1
      %s133 = scalar_select %p130, %s131, %s132
      %p136 = pneg %p130
      %p137 = scmp.eq.s32.totalorder %s23, 1
      %p138 = por %p136, %p137
      %p139 = scmp.ne.s32.totalorder %s131, %s134
      %p140 = scmp.eq.s32.totalorder %s23, 0
      %p141 = por %p139, %p140
      %p142 = scmp.ne.s32.totalorder %s131, %s134
      %p143 = scmp.eq.s32.totalorder %s28, 1
      %p144 = por %p142, %p143
      %p145 = scmp.ne.s32.totalorder %s134, %s135
      %p146 = scmp.eq.s32.totalorder %s28, 0
      %p147 = por %p145, %p146
      %p148 = scmp.ne.s32.totalorder %s134, %s135
      %p149 = scmp.eq.s32.totalorder %s29, 1
      %p150 = por %p148, %p149
      %p152 = scmp.ne.s32.totalorder %s135, %s151
      %p153 = scmp.eq.s32.totalorder %s29, 0
      %p154 = por %p152, %p153
      %p155 = scmp.le.s32.totalorder 1, %s23
      %p156 = scmp.lt.s32.totalorder %s23, 3
      %p157 = pnand %p155, %p156
      %p158 = pneg %p157
      // Predicated region
      $region9: #{tpu_custom_call.1} parent=5 // pred_check
        _
      $region10: #{tpu_custom_call.1} parent=5 // pred_check_branch
        %160 = sbr.rel (%p157) target = $region12
      $region11: #{tpu_custom_call.1} parent=5 // pred_region
        %s161 = ssub.s32 %s23, 1
      $region12: #{tpu_custom_call.1} parent=5 // pred_fallthru
        _
      %p162 = scmp.lt.s32.totalorder %s23, 2
      // Predicated region
      $region13: #{tpu_custom_call.1} parent=5 // pred_check
        %p163 = pneg %p162
      $region14: #{tpu_custom_call.1} parent=5 // pred_check_branch
        %165 = sbr.rel (%p163) target = $region16
      $region15: #{tpu_custom_call.1} parent=5 // pred_region
        // Predicated region
        $region17: #{tpu_custom_call.1} parent=15 // pred_check
          %p166 = pneg %p57
        $region18: #{tpu_custom_call.1} parent=15 // pred_check_branch
          %168 = sbr.rel (%p166) target = $region20
        $region19: #{tpu_custom_call.1} parent=15 // pred_region
          %s169 = sand.u32 %s47, 1
          %s170 = scalar_lea.sflag [#allocation5], %s169
          %s171 = sand.u32 %s47, 1
          %s172 = smul.addr %s171, 24
          %s173 = scalar_lea.vmem [#allocation4], %s172
          %s175 = ssub.s32 384, 384
          %176 = vsyncadd %s170, %s175
          %s177 = sadd.s32 %s31, %s30
          %s178 = smul.addr %s177, 128
          %s179 = scalar_lea.hbm %s1, %s178
          %s180 = sshll.u32 %s173, 4
          %s181 = int_to_ptr.vmem [resolvable:$true] %s180
          %186 = dma.hbm_to_vmem [thread:$0]  %s179, 384, %s181, %s170, 256, 128, 8
        $region20: #{tpu_custom_call.1} parent=15 // pred_fallthru
          _
        // Predicated region
        $region21: #{tpu_custom_call.1} parent=15 // pred_check
          %p187 = pneg %p85
        $region22: #{tpu_custom_call.1} parent=15 // pred_check_branch
          %189 = sbr.rel (%p187) target = $region24
        $region23: #{tpu_custom_call.1} parent=15 // pred_region
          %s190 = sand.u32 %s23, 1
          %s191 = scalar_lea.sflag [#allocation8], %s190
          %s192 = sand.u32 %s75, 1
          %s193 = smul.addr %s192, 24
          %s194 = scalar_lea.vmem [#allocation7], %s193
          %s196 = ssub.s32 384, 384
          %197 = vsyncadd %s191, %s196
          %s198 = sadd.s32 %s31, %s30
          %s199 = smul.addr %s198, 128
          %s200 = scalar_lea.hbm %s2, %s199
          %s201 = sshll.u32 %s194, 4
          %s202 = int_to_ptr.vmem [resolvable:$true] %s201
          %207 = dma.hbm_to_vmem [thread:$0]  %s200, 384, %s202, %s191, 256, 128, 8
        $region24: #{tpu_custom_call.1} parent=15 // pred_fallthru
          _
        // Predicated region
        $region25: #{tpu_custom_call.1} parent=15 // pred_check
          %p208 = pneg %p113
        $region26: #{tpu_custom_call.1} parent=15 // pred_check_branch
          %210 = sbr.rel (%p208) target = $region28
        $region27: #{tpu_custom_call.1} parent=15 // pred_region
          %s211 = sand.u32 %s23, 1
          %s212 = scalar_lea.sflag [#allocation8], %s211
          %s213 = sand.u32 %s103, 1
          %s214 = smul.addr %s213, 8
          %s215 = scalar_lea.vmem [#allocation9], %s214
          %s217 = ssub.s32 128, 128
          %218 = vsyncadd %s212, %s217
          %s219 = sadd.s32 %s31, %s30
          %s220 = smul.addr %s219, 128
          %s221 = scalar_lea.hbm %s3, %s220
          %s223 = sshll.u32 %s215, 4
          %s224 = int_to_ptr.vmem [resolvable:$true] %s223
          %226 = dma.hbm_to_vmem [thread:$0]  %s221, 128, %s224, %s212
        $region28: #{tpu_custom_call.1} parent=15 // pred_fallthru
          _
      $region16: #{tpu_custom_call.1} parent=5 // pred_fallthru
        _
      %p227 = scmp.le.s32.totalorder 1, %s23
      %p228 = scmp.lt.s32.totalorder %s23, 3
      %p229 = pnand %p227, %p228
      %p230 = pneg %p229
      // Predicated region
      $region29: #{tpu_custom_call.1} parent=5 // pred_check
        _
      $region30: #{tpu_custom_call.1} parent=5 // pred_check_branch
        %232 = sbr.rel (%p229) target = $region32
      $region31: #{tpu_custom_call.1} parent=5 // pred_region
        %s233 = ssub.s32 %s23, 1
        %s234 = sand.u32 %s50, 1
        %s235 = scalar_lea.sflag [#allocation5], %s234
        %s236 = sand.u32 %s50, 1
        %s237 = smul.addr %s236, 24
        %s238 = scalar_lea.vmem [#allocation4], %s237
        // Predicated region
        $region33: #{tpu_custom_call.1} parent=31 // pred_check
          %p239 = pneg %p63
        $region34: #{tpu_custom_call.1} parent=31 // pred_check_branch
          %241 = sbr.rel (%p239) target = $region36
        $region35: #{tpu_custom_call.1} parent=31 // pred_region
          %242 = dma.done %s235, 384
        $region36: #{tpu_custom_call.1} parent=31 // pred_fallthru
          _
        %s243 = sand.u32 %s28, 1
        %s244 = scalar_lea.sflag [#allocation8], %s243
        %s245 = sand.u32 %s78, 1
        %s246 = smul.addr %s245, 24
        %s247 = scalar_lea.vmem [#allocation7], %s246
        // Predicated region
        $region37: #{tpu_custom_call.1} parent=31 // pred_check
          %p248 = pneg %p91
        $region38: #{tpu_custom_call.1} parent=31 // pred_check_branch
          %250 = sbr.rel (%p248) target = $region40
        $region39: #{tpu_custom_call.1} parent=31 // pred_region
          %251 = dma.done %s244, 384
        $region40: #{tpu_custom_call.1} parent=31 // pred_fallthru
          _
        %s252 = sand.u32 %s28, 1
        %s253 = scalar_lea.sflag [#allocation8], %s252
        %s254 = sand.u32 %s106, 1
        %s255 = smul.addr %s254, 8
        %s256 = scalar_lea.vmem [#allocation9], %s255
        // Predicated region
        $region41: #{tpu_custom_call.1} parent=31 // pred_check
          %p257 = pneg %p119
        $region42: #{tpu_custom_call.1} parent=31 // pred_check_branch
          %259 = sbr.rel (%p257) target = $region44
        $region43: #{tpu_custom_call.1} parent=31 // pred_region
          %260 = dma.done %s253, 128
        $region44: #{tpu_custom_call.1} parent=31 // pred_fallthru
          _
        %s261 = sand.u32 %s50, 1
        %s262 = scalar_lea.sflag [#allocation5], %s261
        %s263 = sand.u32 %s50, 1
        %s264 = smul.addr %s263, 24
        %s265 = scalar_lea.vmem [#allocation4], %s264
        %p266 = pneg %p63
        %p267 = pneg %p60
        %s268 = sand.u32 %s28, 1
        %s269 = scalar_lea.sflag [#allocation8], %s268
        %s270 = sand.u32 %s78, 1
        %s271 = smul.addr %s270, 24
        %s272 = scalar_lea.vmem [#allocation7], %s271
        %p273 = pneg %p91
        %p274 = pneg %p88
        %s275 = sand.u32 %s28, 1
        %s276 = scalar_lea.sflag [#allocation8], %s275
        %s277 = sand.u32 %s106, 1
        %s278 = smul.addr %s277, 8
        %s279 = scalar_lea.vmem [#allocation9], %s278
        %p280 = pneg %p119
        %p281 = pneg %p116
        %p282 = pneg %p147
        %p283 = pneg %p144
        %s284 = sand.u32 %s134, 1
        %s285 = scalar_lea.sflag [#allocation6], %s284
        %s286 = sand.u32 %s134, 1
        %s287 = smul.addr %s286, 8
        %s288 = scalar_lea.vmem [#allocation10], %s287
        %s289 = smul.u32 %s32, 128
        %s290 = sld [smem:[#allocation3 + %s289]]
        %s291 = scvt.s32.f32 %s290
        %v292 = vld [vmem:[%s247] sm:$0xff]
        %v293 = vld [vmem:[%s238] sm:$0xff]
        %v294 = vmul.f32 %v292, 1.442695
        %v295 = vpow.pop %v294
        %v296 = vadd.f32 %v295, 1e-07
        %v297 = vrcp.pop %v296
        %v298 = vstv %s291
        %v299 = vmul.f32 %v298, %v297
        %v300 = vmul.f32 %v293, %v299
        %s301 = sadd.s32 %s289, 1
        %s302 = sld [smem:[#allocation3 + %s301]]
        %s303 = scvt.s32.f32 %s302
        %s304 = scalar_lea.vmem %s247, 8 [#allocation7]
        %v305 = vld [vmem:[%s304] sm:$0xff]
        %s306 = scalar_lea.vmem %s238, 8 [#allocation4]
        %v307 = vld [vmem:[%s306] sm:$0xff]
        %v308 = vmul.f32 %v305, 1.442695
        %v309 = vpow.pop %v308
        %v310 = vadd.f32 %v309, 1e-07
        %v311 = vrcp.pop %v310
        %v312 = vstv %s303
        %v313 = vmul.f32 %v312, %v311
        %v314 = vmul.f32 %v307, %v313
        %v315 = vadd.f32 %v299, %v313
        %v316 = vadd.f32 %v300, %v314
        %s317 = sadd.s32 %s289, 2
        %s318 = sld [smem:[#allocation3 + %s317]]
        %s319 = scvt.s32.f32 %s318
        %s320 = scalar_lea.vmem %s247, 16 [#allocation7]
        %v321 = vld [vmem:[%s320] sm:$0xff]
        %s322 = scalar_lea.vmem %s238, 16 [#allocation4]
        %v323 = vld [vmem:[%s322] sm:$0xff]
        %v324 = vmul.f32 %v321, 1.442695
        %v325 = vpow.pop %v324
        %v326 = vadd.f32 %v325, 1e-07
        %v327 = vrcp.pop %v326
        %v328 = vstv %s319
        %v329 = vmul.f32 %v328, %v327
        %v330 = vmul.f32 %v323, %v329
        %v331 = vadd.f32 %v315, %v329
        %v332 = vadd.f32 %v316, %v330
        %v333 = vadd.f32 %v331, 1.0
        %v334 = vrcp.pop %v333
        %v335 = vmul.f32 %v332, %v334
        %v336 = vadd.f32 %v334, 1e-07
        %v337 = vrsqrt.pop %v336
        %v338 = vmul.f32 %v336, %v337
        %vm339 = vcmp.eq.f32.partialorder %v336, inf
        %v340 = vsel %vm339, %v336, %v338
        %vm341 = vcmp.eq.f32.partialorder %v336, 0.0
        %v342 = vand.u32 %v336, 2147483648
        %v343 = vsel %vm341, %v342, %v340
        %v344 = vld [vmem:[%s256] sm:$0xff]
        %v345 = vmul.f32 %v343, %v344
        %v346 = vadd.f32 %v335, %v345
        %347 = vst [vmem:[%s288] sm:$0xff] %v346
        %s348 = sand.u32 %s134, 1
        %s349 = scalar_lea.sflag [#allocation6], %s348
        %s350 = sand.u32 %s134, 1
        %s351 = smul.addr %s350, 8
        %s352 = scalar_lea.vmem [#allocation10], %s351
        // Predicated region
        $region45: #{tpu_custom_call.1} parent=31 // pred_check
          %p353 = pneg %p144
        $region46: #{tpu_custom_call.1} parent=31 // pred_check_branch
          %355 = sbr.rel (%p353) target = $region48
        $region47: #{tpu_custom_call.1} parent=31 // pred_region
          %s357 = ssub.s32 128, 128
          %358 = vsyncadd %s349, %s357
          %s359 = sadd.s32 %s33, %s32
          %s360 = smul.addr %s359, 128
          %s361 = scalar_lea.hbm %s4, %s360
          %s363 = sshll.u32 %s352, 4
          %s364 = int_to_ptr.vmem [resolvable:$true] %s363
          %366 = dma.vmem_to_hbm [thread:$0]  %s364, 128, %s361, %s349
        $region48: #{tpu_custom_call.1} parent=31 // pred_fallthru
          _
      $region32: #{tpu_custom_call.1} parent=5 // pred_fallthru
        _
      %p367 = scmp.le.s32.totalorder 2, %s23
      // Predicated region
      $region49: #{tpu_custom_call.1} parent=5 // pred_check
        %p368 = pneg %p367
      $region50: #{tpu_custom_call.1} parent=5 // pred_check_branch
        %370 = sbr.rel (%p368) target = $region52
      $region51: #{tpu_custom_call.1} parent=5 // pred_region
        %s371 = ssub.s32 %s23, 2
        // Predicated region
        $region53: #{tpu_custom_call.1} parent=51 // pred_check
          %p372 = pneg %p150
        $region54: #{tpu_custom_call.1} parent=51 // pred_check_branch
          %374 = sbr.rel (%p372) target = $region56
        $region55: #{tpu_custom_call.1} parent=51 // pred_region
          %s375 = sand.u32 %s135, 1
          %s376 = scalar_lea.sflag [#allocation6], %s375
          %s377 = sand.u32 %s135, 1
          %s378 = smul.addr %s377, 8
          %s379 = scalar_lea.vmem [#allocation10], %s378
          %380 = dma.done %s376, 128
        $region56: #{tpu_custom_call.1} parent=51 // pred_fallthru
          _
      $region52: #{tpu_custom_call.1} parent=5 // pred_fallthru
        _
    $region6: #{tpu_custom_call.1} parent=1 // loop_footer
      %s27 = sadd.s32 1, %s23
    $region7: #{tpu_custom_call.1} parent=1 // loop_footer_branch
      %22 = sbr.rel target = $region3
    $region8: #{tpu_custom_call.1} parent=1 // loop_exit
      _
    %381 = vsyncpa [#allocation5], 1
    %s382 = scalar_lea.sflag [#allocation5], 1
    %383 = vsyncpa %s382, 1
    %384 = vsyncpa [#allocation8], 1
    %s385 = scalar_lea.sflag [#allocation8], 1
    %386 = vsyncpa %s385, 1
    %387 = vsyncpa [#allocation6], 1
    %s388 = scalar_lea.sflag [#allocation6], 1
    %389 = vsyncpa %s388, 1

</llo_original>
